<compile_context>
chip_gen: v5e
topology: v5e:2x2
jax: 0.10.0
libtpu: 0.0.40
codegen_flags: <defaults>
</compile_context>

<pallas_src>
import functools
import math

import jax
import jax.numpy as jnp
from jax.experimental import pallas as pl
from jax.experimental.pallas import tpu as pltpu


# ---------------------------------------------------------------------------
# Pallas kernels
# ---------------------------------------------------------------------------
def _add_pe_kernel_2d(x_ref, pe_ref, o_ref, *, n_repeat):
    # x block: (bt, N*D); pe block: (bt, D) tiled N times along the lane axis.
    o_ref[...] = x_ref[...] + jnp.tile(pe_ref[...], (1, n_repeat))


def _add_pe_kernel_3d(x_ref, pe_ref, o_ref):
    # x block: (bt, N, D); pe block: (bt, D) broadcast over the batch axis.
    o_ref[...] = x_ref[...] + pe_ref[...][:, None, :]


# ---------------------------------------------------------------------------
# Tiling helpers
# ---------------------------------------------------------------------------
def _sublane_pack(itemsize):
    # sublane packing: 8 rows for 4-byte, 16 for 2-byte, 32 for 1-byte dtypes
    return max(1, 32 // itemsize)


def _pick_block_t(T, row_bytes, sublane, target_bytes=4 << 20, min_grid=4):
    """Largest row-tile with block <= ~target_bytes, preferring an even divide
    of T (no ragged masked tail), a sublane multiple, and >= min_grid grid
    steps when T allows (keeps both v7x TensorCores + the pipeline fed)."""
    bt = max(1, int(target_bytes // max(1, row_bytes)))
    bt = min(bt, T)
    if T >= min_grid * sublane:
        bt = min(bt, max(sublane, -(-T // min_grid)))   # cdiv(T, min_grid)
    if bt >= T:
        return T
    bt = max(sublane, (bt // sublane) * sublane)
    for cand in range(bt, sublane - 1, -sublane):       # prefer cand | T
        if T % cand == 0:
            return cand
    return bt


# ---------------------------------------------------------------------------
# Forward wrapper
# ---------------------------------------------------------------------------
def positional_encoding_forward(x, pe, *, block_t=None, force_kernel=False,
                                min_kernel_bytes=1 << 20, donate_x=False):
    """x: (T, N, D) seq-first; pe: (max_len, 1, D). Returns x + pe[:T]."""
    T, N, D = x.shape
    max_len = pe.shape[0]
    assert max_len >= T and pe.shape[-1] == D

    # Squeeze to 2D and pre-cast to x.dtype once (no per-step VPU cast, half
    # the pe DMA bytes for bf16). No [:T] slice: index_map only touches the
    # first ceil(T/block_t) row blocks of the table.
    pe2d = pe.reshape(max_len, D).astype(x.dtype)
    # TODO(synk): pre-casting pe to bf16 differs (by <1 ulp) from PyTorch's
    # fp32-promoted add when x is bf16; accepted for bandwidth.

    itemsize = jnp.dtype(x.dtype).itemsize
    if (T * N * D * itemsize < min_kernel_bytes) and not force_kernel:
        # Tiny input: pallas_call fixed overhead dominates; XLA's fused
        # broadcast-add is already optimal.
        return x + pe2d[:T][:, None, :]

    sublane = _sublane_pack(itemsize)
    lane_dense = (D % 128 != 0) or (N % sublane != 0)
    row_bytes = N * D * itemsize

    if lane_dense:
        # 2D (T, N*D) layout: lane-dense, unmasked full-width stores.
        x_in = x.reshape(T, N * D)
        bt = block_t if block_t is not None else _pick_block_t(T, row_bytes, sublane)
        bt = max(1, min(int(bt), T))
        kernel = functools.partial(_add_pe_kernel_2d, n_repeat=N)
        in_specs = [pl.BlockSpec((bt, N * D), lambda i: (i, 0)),
                    pl.BlockSpec((bt, D), lambda i: (i, 0))]
        out_spec = pl.BlockSpec((bt, N * D), lambda i: (i, 0))
        out_shape = jax.ShapeDtypeStruct((T, N * D), x.dtype)
    else:
        # D and N already lane/sublane friendly: keep the 3D layout.
        x_in = x
        bt = block_t if block_t is not None else _pick_block_t(T, row_bytes, 1)
        bt = max(1, min(int(bt), T))
        kernel = _add_pe_kernel_3d
        in_specs = [pl.BlockSpec((bt, N, D), lambda i: (i, 0, 0)),
                    pl.BlockSpec((bt, D), lambda i: (i, 0))]
        out_spec = pl.BlockSpec((bt, N, D), lambda i: (i, 0, 0))
        out_shape = jax.ShapeDtypeStruct((T, N, D), x.dtype)

    x_block_bytes = bt * N * D * itemsize
    pe_block_bytes = bt * D * itemsize
    # Double-buffered x + out + pe blocks, plus slack. v5e's scoped default is
    # only 16 MiB, so be explicit; stay well under v7x's 64 MiB physical VMEM.
    vmem_limit = 2 * (2 * x_block_bytes + pe_block_bytes) + (4 << 20)
    vmem_limit = int(min(max(vmem_limit, 16 << 20), 48 << 20))

    out = pl.pallas_call(
        kernel,
        out_shape=out_shape,
        grid=(pl.cdiv(T, bt),),
        in_specs=in_specs,
        out_specs=out_spec,
        input_output_aliases={0: 0} if donate_x else {},
        compiler_params=pltpu.CompilerParams(
            dimension_semantics=("parallel",),
            vmem_limit_bytes=vmem_limit),
    )(x_in, pe2d)

    return out.reshape(T, N, D)


# ---------------------------------------------------------------------------
# Module setup (mirrors PositionalEncoding.__init__): plain JAX, runs once.
# ---------------------------------------------------------------------------
def make_positional_encoding(d_model, max_len=1000, dtype=jnp.float32):
    assert d_model % 2 == 0, "d_model must be even (matches the PyTorch buffer)"
    position = jnp.arange(max_len, dtype=jnp.float32)[:, None]            # (L, 1)
    div_term = jnp.exp(
        jnp.arange(0, d_model, 2, dtype=jnp.float32)
        * (-math.log(10000.0) / d_model))                                 # (D/2,)
    angles = position * div_term                                          # (L, D/2)
    pe = jnp.zeros((max_len, d_model), jnp.float32)
    pe = pe.at[:, 0::2].set(jnp.sin(angles))
    pe = pe.at[:, 1::2].set(jnp.cos(angles))
    # unsqueeze(0).transpose(0, 1) -> (max_len, 1, d_model)
    return pe[:, None, :].astype(dtype)


# ---------------------------------------------------------------------------
# Demo / self-check
# ---------------------------------------------------------------------------
if __name__ == "__main__":
    key = jax.random.PRNGKey(0)
    k1, k2 = jax.random.split(key)

    # Case 1: lane-dense 2D path (D=32 < 128, N=4 not sublane-aligned).
    T, N, D = 24, 4, 32
    pe = make_positional_encoding(D, max_len=64)                 # (64, 1, 32)
    x = jax.random.normal(k1, (T, N, D), jnp.float32)
    ref = x + pe[:T]

    out = positional_encoding_forward(x, pe, force_kernel=True)
    out = jax.block_until_ready(out)
    assert out.shape == (T, N, D)
    assert jnp.allclose(out, ref, atol=1e-6, rtol=1e-6)

    # Ragged multi-step grid on the 2D path (block_t=16 doesn't divide T=24).
    out_r = positional_encoding_forward(x, pe, block_t=16, force_kernel=True)
    out_r = jax.block_until_ready(out_r)
    assert jnp.allclose(out_r, ref, atol=1e-6, rtol=1e-6)

    # Case 2: 3D path (D=128 lane-aligned, N=8 sublane-aligned), multi-step.
    T2, N2, D2 = 16, 8, 128
    pe2 = make_positional_encoding(D2, max_len=32)               # (32, 1, 128)
    x2 = jax.random.normal(k2, (T2, N2, D2), jnp.float32)
    ref2 = x2 + pe2[:T2]
    out2 = positional_encoding_forward(x2, pe2, force_kernel=True)
    out2 = jax.block_until_ready(out2)
    assert jnp.allclose(out2, ref2, atol=1e-6, rtol=1e-6)

    # Case 3: tiny-input short-circuit path (plain fused add).
    out3 = jax.block_until_ready(positional_encoding_forward(x, pe))
    assert jnp.allclose(out3, ref, atol=1e-6, rtol=1e-6)

    print("KERNEL_OK")
</pallas_src>

<mosaic_0001>
module attributes {stable_mosaic.version = 11 : i64} {
  func.func @_add_pe_kernel_2d(%arg0: i32, %arg1: memref<24x128xf32, #tpu.memory_space<vmem>>, %arg2: memref<24x32xf32, #tpu.memory_space<vmem>>, %arg3: memref<24x128xf32, #tpu.memory_space<vmem>>) attributes {dimension_semantics = [#tpu.dimension_semantics<parallel>], iteration_bounds = array<i64: 1>, scalar_prefetch = 0 : i64, scratch_operands = 0 : i64, tpu.core_type = #tpu.core_type<tc>, window_params = [{transform_indices = @transform_0, window_bounds = array<i64: 24, 128>}, {transform_indices = @transform_1, window_bounds = array<i64: 24, 32>}, {transform_indices = @transform_2, window_bounds = array<i64: 24, 128>}]} {
    %c0 = arith.constant 0 : index
    %c0_0 = arith.constant 0 : index
    %0 = vector.load %arg1[%c0, %c0_0] : memref<24x128xf32, #tpu.memory_space<vmem>>, vector<24x128xf32>
    %c0_1 = arith.constant 0 : index
    %c0_2 = arith.constant 0 : index
    %1 = vector.load %arg2[%c0_1, %c0_2] : memref<24x32xf32, #tpu.memory_space<vmem>>, vector<24x32xf32>
    %2 = tpu.concatenate %1, %1, %1, %1 in 1 : vector<24x32xf32>, vector<24x32xf32>, vector<24x32xf32>, vector<24x32xf32> -> vector<24x128xf32>
    %3 = arith.addf %0, %2 : vector<24x128xf32>
    %c0_3 = arith.constant 0 : index
    %c0_4 = arith.constant 0 : index
    %4 = vector.load %arg3[%c0_3, %c0_4] : memref<24x128xf32, #tpu.memory_space<vmem>>, vector<24x128xf32>
    tpu.vector_store %arg3[%c0_3, %c0_4], %3 {strides = array<i32>} : memref<24x128xf32, #tpu.memory_space<vmem>>, vector<24x128xf32>,
    return
  }
  func.func @transform_0(%arg0: i32) -> (i32, i32) {
    %c0_i32 = arith.constant 0 : i32
    %c0_i32_0 = arith.constant 0 : i32
    return %arg0, %c0_i32 : i32, i32
  }
  func.func @transform_1(%arg0: i32) -> (i32, i32) {
    %c0_i32 = arith.constant 0 : i32
    %c0_i32_0 = arith.constant 0 : i32
    return %arg0, %c0_i32 : i32, i32
  }
  func.func @transform_2(%arg0: i32) -> (i32, i32) {
    %c0_i32 = arith.constant 0 : i32
    %c0_i32_0 = arith.constant 0 : i32
    return %arg0, %c0_i32 : i32, i32
  }
}

</mosaic_0001>

<llo_original>
// kernel: tpu_custom_call.1
$region0: #{tpu_custom_call.1}
  #allocation0 [shape = 'u32[]', space=smem, size = 0x4, offset = 0x4, fixed_abs, tag = 'smem constant byte address 0x4 - core index']
  #allocation1 [shape = 'u32[72,128]{1,0:T(1,128)}', space=vmem, size = 0x9000, scoped, tag = 'internal scratch']
  %s0 = inlined_call_operand.vmem [shape: f32[24,128], index: 0, kind: input, shape index: {}]
  %s1 = inlined_call_operand.vmem [shape: f32[64,32], index: 1, kind: input, shape index: {}]
  %s2 = inlined_call_operand.hbm [shape: f32[24,128], index: 2, kind: output, shape index: {}]
  %s3 = sld [smem:[#allocation0]]
  $region18: #{tpu_custom_call.1} parent=0
    _
  %s5 = ssub.s32 1, %s3
  %s6 = scalar_select 0, %s5, %s3
  $region1: #{tpu_custom_call.1} parent=0
    #allocation2 [shape = 'u8[12288]{0}', space=vmem, size = 0x3000, scoped, tag = 'output window, operand 0, single buffered']
    #allocation3 [shape = 's32[1]{0}', space=sflag, size = 0x4, scoped, tag = 'scoped memory for tpu_custom_call.1']
    %7 = vsyncpa [#allocation3], 0
    // Predicated region
    $region2: #{tpu_custom_call.1} parent=1 // pred_check
      _
    $region3: #{tpu_custom_call.1} parent=1 // pred_check_branch
      %9 = sbr.rel (0) target = $region5
    $region4: #{tpu_custom_call.1} parent=1 // pred_region
      _
    $region5: #{tpu_custom_call.1} parent=1 // pred_fallthru
      _
    // Predicated region
    $region6: #{tpu_custom_call.1} parent=1 // pred_check
      _
    $region7: #{tpu_custom_call.1} parent=1 // pred_check_branch
      %11 = sbr.rel (0) target = $region9
    $region8: #{tpu_custom_call.1} parent=1 // pred_region
      _
    $region9: #{tpu_custom_call.1} parent=1 // pred_fallthru
      _
    %v12 = vld [vmem:[%s0] sm:$0xff]
    %v13 = vld [vmem:[%s0 + $0x8] sm:$0xff]
    %v14 = vld [vmem:[%s0 + $0x10] sm:$0xff]
    %v15 = vld [vmem:[%s1] sm:$0xff]
    %v16 = vld [vmem:[%s1 + $0x8] sm:$0xff]
    %v17 = vld [vmem:[%s1 + $0x10] sm:$0xff]
    %21 = vrot.lane.b32.xlu0 %v15, 32
    %v22 = vpop.permute.xlu0 %21
    %23 = vrot.lane.b32.xlu0 %v16, 32
    %v24 = vpop.permute.xlu0 %23
    %25 = vrot.lane.b32.xlu0 %v17, 32
    %v26 = vpop.permute.xlu0 %25
    %30 = vrot.lane.b32.xlu0 %v15, 64
    %v31 = vpop.permute.xlu0 %30
    %32 = vrot.lane.b32.xlu0 %v16, 64
    %v33 = vpop.permute.xlu0 %32
    %34 = vrot.lane.b32.xlu0 %v17, 64
    %v35 = vpop.permute.xlu0 %34
    %39 = vrot.lane.b32.xlu0 %v15, 96
    %v40 = vpop.permute.xlu0 %39
    %41 = vrot.lane.b32.xlu0 %v16, 96
    %v42 = vpop.permute.xlu0 %41
    %43 = vrot.lane.b32.xlu0 %v17, 96
    %v44 = vpop.permute.xlu0 %43
    %vm48 = vcmask 261120
    %v49 = vsel %vm48, %v15, %v22
    %v50 = vsel %vm48, %v16, %v24
    %v51 = vsel %vm48, %v17, %v26
    %vm52 = vcmask 523264
    %v53 = vsel %vm52, %v49, %v31
    %v54 = vsel %vm52, %v50, %v33
    %v55 = vsel %vm52, %v51, %v35
    %vm56 = vcmask 785408
    %v57 = vsel %vm56, %v53, %v40
    %v58 = vsel %vm56, %v54, %v42
    %v59 = vsel %vm56, %v55, %v44
    %v60 = vadd.f32 %v12, %v57
    %v61 = vadd.f32 %v13, %v58
    %v62 = vadd.f32 %v14, %v59
    %63 = vst [vmem:[#allocation2] sm:$0xff] %v60
    %64 = vst [vmem:[#allocation2 + $0x8] sm:$0xff] %v61
    %65 = vst [vmem:[#allocation2 + $0x10] sm:$0xff] %v62
    // Predicated region
    $region10: #{tpu_custom_call.1} parent=1 // pred_check
      _
    $region11: #{tpu_custom_call.1} parent=1 // pred_check_branch
      %67 = sbr.rel (0) target = $region13
    $region12: #{tpu_custom_call.1} parent=1 // pred_region
      %69 = vsyncadd [#allocation3], 0
      %s70 = sshll.u32 [#allocation2], 4
      %s71 = int_to_ptr.vmem [resolvable:$true] %s70
      %s72 = sshll.u32 %s2, 4
      %s73 = int_to_ptr.hbm [resolvable:$true] %s72
      %78 = dma.vmem_to_hbm [thread:$0]  %s71, 384, %s73, [#allocation3], 128, 128, 8
    $region13: #{tpu_custom_call.1} parent=1 // pred_fallthru
      _
    // Predicated region
    $region14: #{tpu_custom_call.1} parent=1 // pred_check
      _
    $region15: #{tpu_custom_call.1} parent=1 // pred_check_branch
      %80 = sbr.rel (0) target = $region17
    $region16: #{tpu_custom_call.1} parent=1 // pred_region
      %82 = dma.done [#allocation3], 384
    $region17: #{tpu_custom_call.1} parent=1 // pred_fallthru
      _
    %83 = vsyncpa [#allocation3], 1

</llo_original>
